<compile_context>
chip_gen: v7x
topology: tpu7x:2x2x1
jax: 0.10.0
libtpu: 0.0.40
codegen_flags: <defaults>
</compile_context>

<pallas_src>
import jax
import jax.numpy as jnp
from jax.experimental import pallas as pl
from jax.experimental.pallas import tpu as pltpu


def _finalconv_vpu_kernel(w_ref, b_ref, x_ref, o_ref):
    """Tiny-channel path: unrolled multiply-accumulate on the VPU.

    w_ref: (Cout, Cin) f32 in SMEM
    b_ref: (Cout,)     f32 in SMEM
    x_ref: (Cin, ts)       in VMEM
    o_ref: (Cout, ts)      in VMEM
    """
    cout, cin = w_ref.shape
    # Hoist the x row loads (and the cast to f32) out of the `co` loop:
    # Cin vector loads total instead of Cin*Cout (the vld slot is the binding
    # unit once the kernel runs at HBM roofline).
    xrows = [x_ref[ci:ci + 1, :].astype(jnp.float32) for ci in range(cin)]
    rows = []
    for co in range(cout):
        acc = xrows[0] * w_ref[co, 0]
        for ci in range(1, cin):
            acc = acc + xrows[ci] * w_ref[co, ci]
        rows.append(acc + b_ref[co])
    # One stacked (Cout, ts) store instead of Cout sublane-masked row stores
    # (v5e has a single vst slot; the sublane packing rides the idle XLU).
    o_ref[...] = jnp.concatenate(rows, axis=0).astype(o_ref.dtype)


def _finalconv_mxu_kernel(w_ref, b_ref, x_ref, o_ref):
    """General path (larger channel counts): MXU matmul over channels.

    w_ref: (Cout, Cin) in VMEM (same dtype as x)
    b_ref: (Cout,)     f32 in SMEM
    x_ref: (Cin, ts)       in VMEM
    o_ref: (Cout, ts)      in VMEM
    """
    acc = jnp.dot(w_ref[...], x_ref[...], preferred_element_type=jnp.float32)
    cout = acc.shape[0]
    # Bias from SMEM scalars (no degenerate 1-lane VMEM block / per-tile DMA).
    bcol = jnp.concatenate(
        [jnp.full((1, 1), b_ref[co], dtype=jnp.float32) for co in range(cout)],
        axis=0)
    o_ref[...] = (acc + bcol).astype(o_ref.dtype)


def _vmem_capacity_bytes():
    """Per-TensorCore VMEM capacity; conservative (v7x-sized) fallback."""
    try:
        cap = getattr(pltpu.get_tpu_info(), "vmem_capacity_bytes", None)
        if cap:
            return int(cap)
    except Exception:
        pass
    return 64 * 1024 * 1024


def final_conv(x_nchw, weight, bias, *, ts=None):
    """1x1 Conv2d forward (FinalConv).

    x_nchw: (N, Cin, H, W)
    weight: (Cout, Cin, 1, 1)   (PyTorch Conv2d layout)
    bias:   (Cout,)
    ts:     optional spatial-tile override (lanes); default = VMEM-derived cap.
    returns (N, Cout, H, W), same dtype as x.
    """
    N, Cin, H, W = x_nchw.shape
    Cout = weight.shape[0]
    HW = H * W

    # Free reshape: NCHW is already channels-first, merging H,W costs nothing.
    x3 = x_nchw.reshape(N, Cin, HW)

    # --- VMEM accounting (sublane-padded, double-buffered, real itemsize) ---
    itemsize = jnp.dtype(x_nchw.dtype).itemsize
    sub = {4: 8, 2: 16, 1: 32}.get(itemsize, 8)      # sublane multiple per dtype
    pad_cin = pl.cdiv(Cin, sub) * sub
    pad_cout = pl.cdiv(Cout, sub) * sub
    per_lane_bytes = 2 * (pad_cin + pad_cout) * itemsize   # 2x = double buffer

    # Generation-aware block budget: 3/8 of per-core VMEM
    #   v5e/v6e (128 MiB) -> ~48 MiB,  v7x (64 MiB) -> ~24 MiB.
    vmem_cap = _vmem_capacity_bytes()
    block_budget = (vmem_cap * 3) // 8

    ts_cap = max(128, (block_budget // per_lane_bytes) // 128 * 128)
    ts_eff = ts_cap if ts is None else min(int(ts), ts_cap)
    if HW <= ts_eff:
        ts_eff = HW                                  # full extent: legal as-is
    else:
        ts_eff = max(128, (ts_eff // 128) * 128)     # lane-dense tile
    n_tiles = pl.cdiv(HW, ts_eff)                    # ragged last tile: masked

    use_vpu = (Cin <= 8) and (Cout <= 8)

    # Spatial tiles lead the grid so the megacore split (v7x) shards the big
    # axis even for N=1; batch axis second.  Both axes are independent.
    x_spec = pl.BlockSpec((None, Cin, ts_eff), lambda s, n: (n, 0, s))
    o_spec = pl.BlockSpec((None, Cout, ts_eff), lambda s, n: (n, 0, s))

    if use_vpu:
        kernel = _finalconv_vpu_kernel
        w_arg = weight.reshape(Cout, Cin).astype(jnp.float32)
        b_arg = bias.astype(jnp.float32)
        w_spec = pl.BlockSpec(memory_space=pltpu.MemorySpace.SMEM)
        b_spec = pl.BlockSpec(memory_space=pltpu.MemorySpace.SMEM)
    else:
        kernel = _finalconv_mxu_kernel
        # Native-dtype MXU: no VPU promotion pass over the big activation tile
        # when x is bf16; accumulation stays f32 via preferred_element_type.
        w_arg = weight.reshape(Cout, Cin).astype(x_nchw.dtype)
        b_arg = bias.astype(jnp.float32)
        w_spec = pl.BlockSpec((Cout, Cin), lambda s, n: (0, 0))
        b_spec = pl.BlockSpec(memory_space=pltpu.MemorySpace.SMEM)

    # Scoped-VMEM limit: actual double-buffered block bytes plus headroom for
    # in-kernel f32 intermediates, clamped well under the smallest physical
    # VMEM (v7x: 64 MiB per core).
    block_bytes = per_lane_bytes * ts_eff
    vmem_limit = 2 * block_bytes + (8 << 20)
    vmem_limit = max(vmem_limit, 32 << 20)
    vmem_limit = min(vmem_limit, (vmem_cap * 7) // 8)

    out3 = pl.pallas_call(
        kernel,
        out_shape=jax.ShapeDtypeStruct((N, Cout, HW), x_nchw.dtype),
        grid_spec=pltpu.PrefetchScalarGridSpec(
            num_scalar_prefetch=0,
            grid=(n_tiles, N),
            in_specs=[w_spec, b_spec, x_spec],
            out_specs=o_spec,
        ),
        compiler_params=pltpu.CompilerParams(
            dimension_semantics=("parallel", "parallel"),
            vmem_limit_bytes=int(vmem_limit)),
    )(w_arg, b_arg, x3)

    # Free reshape back to NCHW.
    return out3.reshape(N, Cout, H, W)


if __name__ == "__main__":
    key = jax.random.PRNGKey(0)

    def ref_conv(x, w, b):
        co, ci = w.shape[0], w.shape[1]
        return (jnp.einsum("nchw,oc->nohw", x, w.reshape(co, ci))
                + b.reshape(1, co, 1, 1))

    # 1) FinalConv(in_chs=4, out_chs=3): tiny-channel VPU path, single tile.
    k1, k2, k3, key = jax.random.split(key, 4)
    N, Cin, H, W, Cout = 2, 4, 16, 16, 3
    x = jax.random.normal(k1, (N, Cin, H, W), dtype=jnp.float32)
    w = jax.random.normal(k2, (Cout, Cin, 1, 1), dtype=jnp.float32) * 0.1
    b = jax.random.normal(k3, (Cout,), dtype=jnp.float32) * 0.1
    out = jax.block_until_ready(final_conv(x, w, b))
    assert out.shape == (N, Cout, H, W)
    assert jnp.allclose(out, ref_conv(x, w, b), atol=1e-5, rtol=1e-5)

    # 2) VPU path with multiple spatial tiles + a ragged last tile (ts=128).
    k1, k2, k3, key = jax.random.split(key, 4)
    N, Cin, H, W, Cout = 1, 4, 20, 20, 3
    x = jax.random.normal(k1, (N, Cin, H, W), dtype=jnp.float32)
    w = jax.random.normal(k2, (Cout, Cin, 1, 1), dtype=jnp.float32) * 0.1
    b = jax.random.normal(k3, (Cout,), dtype=jnp.float32) * 0.1
    out = jax.block_until_ready(final_conv(x, w, b, ts=128))
    assert jnp.allclose(out, ref_conv(x, w, b), atol=1e-5, rtol=1e-5)

    # 3) Larger-channel MXU path (bias from SMEM scalars, native-dtype weight).
    k1, k2, k3, key = jax.random.split(key, 4)
    N, Cin, H, W, Cout = 2, 16, 8, 8, 32
    x = jax.random.normal(k1, (N, Cin, H, W), dtype=jnp.float32)
    w = jax.random.normal(k2, (Cout, Cin, 1, 1), dtype=jnp.float32) * 0.1
    b = jax.random.normal(k3, (Cout,), dtype=jnp.float32) * 0.1
    out = jax.block_until_ready(final_conv(x, w, b))
    # MXU-precision tolerance (f32 matmul decomposed on the MXU).
    assert jnp.allclose(out, ref_conv(x, w, b), atol=1e-2, rtol=1e-2)

    print("KERNEL_OK")
</pallas_src>

<mosaic_0001>
module attributes {stable_mosaic.version = 11 : i64} {
  func.func @_finalconv_vpu_kernel(%arg0: i32, %arg1: i32, %arg2: memref<3x4xf32, #tpu.memory_space<smem>>, %arg3: memref<3xf32, #tpu.memory_space<smem>>, %arg4: memref<1x4x256xf32, #tpu.memory_space<vmem>>, %arg5: memref<1x3x256xf32, #tpu.memory_space<vmem>>) attributes {dimension_semantics = [#tpu.dimension_semantics<parallel>, #tpu.dimension_semantics<parallel>], iteration_bounds = array<i64: 1, 2>, scalar_prefetch = 0 : i64, scratch_operands = 0 : i64, tpu.core_type = #tpu.core_type<tc>, window_params = [{transform_indices = @transform_0, window_bounds = array<i64: 3, 4>}, {transform_indices = @transform_1, window_bounds = array<i64: 3>}, {transform_indices = @transform_2, window_bounds = array<i64: 1, 4, 256>}, {transform_indices = @transform_3, window_bounds = array<i64: 1, 3, 256>}]} {
    %c0 = arith.constant 0 : index
    %c0_0 = arith.constant 0 : index
    %c0_1 = arith.constant 0 : index
    %0 = vector.load %arg4[%c0, %c0_0, %c0_1] : memref<1x4x256xf32, #tpu.memory_space<vmem>>, vector<1x1x256xf32>
    %1 = vector.shape_cast %0 : vector<1x1x256xf32> to vector<1x256xf32>
    %c0_2 = arith.constant 0 : index
    %c1 = arith.constant 1 : index
    %c0_3 = arith.constant 0 : index
    %2 = vector.load %arg4[%c0_2, %c1, %c0_3] : memref<1x4x256xf32, #tpu.memory_space<vmem>>, vector<1x1x256xf32>
    %3 = vector.shape_cast %2 : vector<1x1x256xf32> to vector<1x256xf32>
    %c0_4 = arith.constant 0 : index
    %c2 = arith.constant 2 : index
    %c0_5 = arith.constant 0 : index
    %4 = vector.load %arg4[%c0_4, %c2, %c0_5] : memref<1x4x256xf32, #tpu.memory_space<vmem>>, vector<1x1x256xf32>
    %5 = vector.shape_cast %4 : vector<1x1x256xf32> to vector<1x256xf32>
    %c0_6 = arith.constant 0 : index
    %c3 = arith.constant 3 : index
    %c0_7 = arith.constant 0 : index
    %6 = vector.load %arg4[%c0_6, %c3, %c0_7] : memref<1x4x256xf32, #tpu.memory_space<vmem>>, vector<1x1x256xf32>
    %7 = vector.shape_cast %6 : vector<1x1x256xf32> to vector<1x256xf32>
    %c0_8 = arith.constant 0 : index
    %c0_9 = arith.constant 0 : index
    %8 = memref.load %arg2[%c0_8, %c0_9] : memref<3x4xf32, #tpu.memory_space<smem>>
    %9 = vector.broadcast %8 : f32 to vector<1x256xf32>
    %10 = arith.mulf %1, %9 : vector<1x256xf32>
    %c0_10 = arith.constant 0 : index
    %c1_11 = arith.constant 1 : index
    %11 = memref.load %arg2[%c0_10, %c1_11] : memref<3x4xf32, #tpu.memory_space<smem>>
    %12 = vector.broadcast %11 : f32 to vector<1x256xf32>
    %13 = arith.mulf %3, %12 : vector<1x256xf32>
    %14 = arith.addf %10, %13 : vector<1x256xf32>
    %c0_12 = arith.constant 0 : index
    %c2_13 = arith.constant 2 : index
    %15 = memref.load %arg2[%c0_12, %c2_13] : memref<3x4xf32, #tpu.memory_space<smem>>
    %16 = vector.broadcast %15 : f32 to vector<1x256xf32>
    %17 = arith.mulf %5, %16 : vector<1x256xf32>
    %18 = arith.addf %14, %17 : vector<1x256xf32>
    %c0_14 = arith.constant 0 : index
    %c3_15 = arith.constant 3 : index
    %19 = memref.load %arg2[%c0_14, %c3_15] : memref<3x4xf32, #tpu.memory_space<smem>>
    %20 = vector.broadcast %19 : f32 to vector<1x256xf32>
    %21 = arith.mulf %7, %20 : vector<1x256xf32>
    %22 = arith.addf %18, %21 : vector<1x256xf32>
    %c0_16 = arith.constant 0 : index
    %23 = memref.load %arg3[%c0_16] : memref<3xf32, #tpu.memory_space<smem>>
    %24 = vector.broadcast %23 : f32 to vector<1x256xf32>
    %25 = arith.addf %22, %24 : vector<1x256xf32>
    %c1_17 = arith.constant 1 : index
    %c0_18 = arith.constant 0 : index
    %26 = memref.load %arg2[%c1_17, %c0_18] : memref<3x4xf32, #tpu.memory_space<smem>>
    %27 = vector.broadcast %26 : f32 to vector<1x256xf32>
    %28 = arith.mulf %1, %27 : vector<1x256xf32>
    %c1_19 = arith.constant 1 : index
    %c1_20 = arith.constant 1 : index
    %29 = memref.load %arg2[%c1_19, %c1_20] : memref<3x4xf32, #tpu.memory_space<smem>>
    %30 = vector.broadcast %29 : f32 to vector<1x256xf32>
    %31 = arith.mulf %3, %30 : vector<1x256xf32>
    %32 = arith.addf %28, %31 : vector<1x256xf32>
    %c1_21 = arith.constant 1 : index
    %c2_22 = arith.constant 2 : index
    %33 = memref.load %arg2[%c1_21, %c2_22] : memref<3x4xf32, #tpu.memory_space<smem>>
    %34 = vector.broadcast %33 : f32 to vector<1x256xf32>
    %35 = arith.mulf %5, %34 : vector<1x256xf32>
    %36 = arith.addf %32, %35 : vector<1x256xf32>
    %c1_23 = arith.constant 1 : index
    %c3_24 = arith.constant 3 : index
    %37 = memref.load %arg2[%c1_23, %c3_24] : memref<3x4xf32, #tpu.memory_space<smem>>
    %38 = vector.broadcast %37 : f32 to vector<1x256xf32>
    %39 = arith.mulf %7, %38 : vector<1x256xf32>
    %40 = arith.addf %36, %39 : vector<1x256xf32>
    %c1_25 = arith.constant 1 : index
    %41 = memref.load %arg3[%c1_25] : memref<3xf32, #tpu.memory_space<smem>>
    %42 = vector.broadcast %41 : f32 to vector<1x256xf32>
    %43 = arith.addf %40, %42 : vector<1x256xf32>
    %c2_26 = arith.constant 2 : index
    %c0_27 = arith.constant 0 : index
    %44 = memref.load %arg2[%c2_26, %c0_27] : memref<3x4xf32, #tpu.memory_space<smem>>
    %45 = vector.broadcast %44 : f32 to vector<1x256xf32>
    %46 = arith.mulf %1, %45 : vector<1x256xf32>
    %c2_28 = arith.constant 2 : index
    %c1_29 = arith.constant 1 : index
    %47 = memref.load %arg2[%c2_28, %c1_29] : memref<3x4xf32, #tpu.memory_space<smem>>
    %48 = vector.broadcast %47 : f32 to vector<1x256xf32>
    %49 = arith.mulf %3, %48 : vector<1x256xf32>
    %50 = arith.addf %46, %49 : vector<1x256xf32>
    %c2_30 = arith.constant 2 : index
    %c2_31 = arith.constant 2 : index
    %51 = memref.load %arg2[%c2_30, %c2_31] : memref<3x4xf32, #tpu.memory_space<smem>>
    %52 = vector.broadcast %51 : f32 to vector<1x256xf32>
    %53 = arith.mulf %5, %52 : vector<1x256xf32>
    %54 = arith.addf %50, %53 : vector<1x256xf32>
    %c2_32 = arith.constant 2 : index
    %c3_33 = arith.constant 3 : index
    %55 = memref.load %arg2[%c2_32, %c3_33] : memref<3x4xf32, #tpu.memory_space<smem>>
    %56 = vector.broadcast %55 : f32 to vector<1x256xf32>
    %57 = arith.mulf %7, %56 : vector<1x256xf32>
    %58 = arith.addf %54, %57 : vector<1x256xf32>
    %c2_34 = arith.constant 2 : index
    %59 = memref.load %arg3[%c2_34] : memref<3xf32, #tpu.memory_space<smem>>
    %60 = vector.broadcast %59 : f32 to vector<1x256xf32>
    %61 = arith.addf %58, %60 : vector<1x256xf32>
    %62 = tpu.concatenate %25, %43, %61 in 0 : vector<1x256xf32>, vector<1x256xf32>, vector<1x256xf32> -> vector<3x256xf32>
    %c0_35 = arith.constant 0 : index
    %c0_36 = arith.constant 0 : index
    %c0_37 = arith.constant 0 : index
    %63 = vector.load %arg5[%c0_35, %c0_36, %c0_37] : memref<1x3x256xf32, #tpu.memory_space<vmem>>, vector<1x3x256xf32>
    %64 = vector.shape_cast %63 : vector<1x3x256xf32> to vector<3x256xf32>
    %65 = vector.shape_cast %62 : vector<3x256xf32> to vector<1x3x256xf32>
    tpu.vector_store %arg5[%c0_35, %c0_36, %c0_37], %65 {strides = array<i32>} : memref<1x3x256xf32, #tpu.memory_space<vmem>>, vector<1x3x256xf32>,
    return
  }
  func.func @transform_0(%arg0: i32, %arg1: i32) -> (i32, i32) {
    %c0_i32 = arith.constant 0 : i32
    %c0_i32_0 = arith.constant 0 : i32
    %c0_i32_1 = arith.constant 0 : i32
    return %c0_i32, %c0_i32_0 : i32, i32
  }
  func.func @transform_1(%arg0: i32, %arg1: i32) -> i32 {
    %c0_i32 = arith.constant 0 : i32
    %c0_i32_0 = arith.constant 0 : i32
    return %c0_i32 : i32
  }
  func.func @transform_2(%arg0: i32, %arg1: i32) -> (i32, i32, i32) {
    %c0_i32 = arith.constant 0 : i32
    %c0_i32_0 = arith.constant 0 : i32
    return %arg1, %c0_i32, %arg0 : i32, i32, i32
  }
  func.func @transform_3(%arg0: i32, %arg1: i32) -> (i32, i32, i32) {
    %c0_i32 = arith.constant 0 : i32
    %c0_i32_0 = arith.constant 0 : i32
    return %arg1, %c0_i32, %arg0 : i32, i32, i32
  }
}

</mosaic_0001>

<llo_original>
// kernel: tpu_custom_call.1
$region0: #{tpu_custom_call.1}
  #allocation0 [shape = 'u32[]', space=smem, size = 0x4, offset = 0x4, fixed_abs, tag = 'smem constant byte address 0x4 - core index']
  #allocation1 [shape = 'u32[144,128]{1,0:T(1,128)}', space=vmem, size = 0x12000, scoped, tag = 'internal scratch']
  %s0 = inlined_call_operand.hbm [shape: f32[3,4], index: 0, kind: input, shape index: {}]
  %s1 = inlined_call_operand.vmem [shape: f32[3], index: 1, kind: input, shape index: {}]
  %s2 = inlined_call_operand.hbm [shape: f32[2,4,256], index: 2, kind: input, shape index: {}]
  %s3 = inlined_call_operand.vmem [shape: f32[2,3,256], index: 3, kind: output, shape index: {}]
  %s4 = sld [smem:[#allocation0]]
  $region57: #{tpu_custom_call.1} parent=0
    _
  %s6 = ssub.s32 1, %s4
  %s7 = scalar_select 0, %s6, %s4
  $region1: #{tpu_custom_call.1} parent=0
    #allocation2 [shape = 'u8[2048]{0}', space=smem, size = 0x800, scoped, tag = 'input window, operand 0, single buffered']
    #allocation3 [shape = 's32[2]{0}', space=sflag, size = 0x8, scoped, tag = 'scoped memory for tpu_custom_call.1']
    #allocation4 [shape = 's32[2]{0}', space=sflag, size = 0x8, scoped, tag = 'scoped memory for tpu_custom_call.1']
    #allocation5 [shape = 's32[2]{0}', space=sflag, size = 0x8, scoped, tag = 'scoped memory for tpu_custom_call.1']
    #allocation6 [shape = 'u8[512]{0}', space=smem, size = 0x200, scoped, tag = 'input window, operand 1, single buffered']
    #allocation7 [shape = 'u8[8192]{0}', space=vmem, size = 0x2000, scoped, tag = 'input window, operand 2']
    %8 = vsyncpa [#allocation4], 0
    %9 = vsyncpa [#allocation5], 0
    %10 = vsyncpa [#allocation3], 0
    %s11 = scalar_lea.sflag [#allocation3], 1
    %12 = vsyncpa %s11, 0
    loop: start=0, step=1, limit=4
    $region2: #{tpu_custom_call.1} parent=1 // loop_pre_header
      _
    $region3: #{tpu_custom_call.1} parent=1 // loop_header
      %s14 = sphi 0, %s18
      %p15 = scmp.ge.s32.totalorder %s14, 4
      %s21 = sphi 0, %s33
      %s22 = sphi 0, %s29
      %s23 = sphi 0, %s21
      %s24 = sphi 0, %s22
      %s25 = sphi 0, %s23
      %s26 = sphi 0, %s24
      %s34 = sphi 0, %s34
      %s36 = sphi 0, %s34
      %s37 = sphi 0, %s36
      %s51 = sphi 0, %s37
      %s55 = sphi 0, %s55
      %s57 = sphi 0, %s55
      %s58 = sphi 0, %s57
      %s72 = sphi 0, %s58
      %s80 = sphi 0, %s82
      %s83 = sphi 0, %s80
      %s84 = sphi 0, %s83
      %s100 = sphi 0, %s84
      %s108 = sphi 0, %s110
      %s111 = sphi 0, %s108
      %s112 = sphi 0, %s111
      %s128 = sphi 0, %s112
    $region4: #{tpu_custom_call.1} parent=1 // loop_header_branch
      %17 = sbr.rel (%p15) target = $region8
    $region5: #{tpu_custom_call.1} parent=1 // loop_body
      %s19 = ssub.s32 %s14, 1
      %s20 = ssub.s32 %s14, 2
      %s27 = sadd.s32 1, %s22
      %p28 = scmp.ge.s32.totalorder %s27, 2
      %s29 = scalar_select %p28, 0, %s27
      %s30 = sadd.s32 1, %s21
      %s31 = scalar_select %p28, %s30, %s21
      %p32 = scmp.ge.s32.totalorder %s31, 1
      %s33 = scalar_select %p32, 0, %s31
      %s35 = sadd.s32 %s34, 1
      %p38 = scmp.eq.s32.totalorder %s14, 1
      %p39 = scmp.ne.s32.totalorder %s34, %s36
      %p40 = scmp.eq.s32.totalorder %s14, 0
      %p41 = por %p39, %p40
      %p42 = scmp.ne.s32.totalorder %s34, %s36
      %p43 = scmp.eq.s32.totalorder %s19, 1
      %p44 = por %p42, %p43
      %p45 = scmp.ne.s32.totalorder %s36, %s37
      %p46 = scmp.eq.s32.totalorder %s19, 0
      %p47 = por %p45, %p46
      %p48 = scmp.ne.s32.totalorder %s36, %s37
      %p49 = scmp.eq.s32.totalorder %s20, 1
      %p50 = por %p48, %p49
      %p52 = scmp.ne.s32.totalorder %s37, %s51
      %p53 = scmp.eq.s32.totalorder %s20, 0
      %p54 = por %p52, %p53
      %s56 = sadd.s32 %s55, 1
      %p59 = scmp.eq.s32.totalorder %s14, 1
      %p60 = scmp.ne.s32.totalorder %s55, %s57
      %p61 = scmp.eq.s32.totalorder %s14, 0
      %p62 = por %p60, %p61
      %p63 = scmp.ne.s32.totalorder %s55, %s57
      %p64 = scmp.eq.s32.totalorder %s19, 1
      %p65 = por %p63, %p64
      %p66 = scmp.ne.s32.totalorder %s57, %s58
      %p67 = scmp.eq.s32.totalorder %s19, 0
      %p68 = por %p66, %p67
      %p69 = scmp.ne.s32.totalorder %s57, %s58
      %p70 = scmp.eq.s32.totalorder %s20, 1
      %p71 = por %p69, %p70
      %p73 = scmp.ne.s32.totalorder %s58, %s72
      %p74 = scmp.eq.s32.totalorder %s20, 0
      %p75 = por %p73, %p74
      %s76 = ssub.s32 %s22, %s29
      %s77 = ssub.s32 %s21, %s33
      %s78 = sor.u32 %s76, %s77
      %p79 = scmp.eq.s32.totalorder %s78, 0
      %s81 = sadd.s32 %s80, 1
      %s82 = scalar_select %p79, %s80, %s81
      %p85 = pneg %p79
      %p86 = scmp.eq.s32.totalorder %s14, 1
      %p87 = por %p85, %p86
      %p88 = scmp.ne.s32.totalorder %s80, %s83
      %p89 = scmp.eq.s32.totalorder %s14, 0
      %p90 = por %p88, %p89
      %p91 = scmp.ne.s32.totalorder %s80, %s83
      %p92 = scmp.eq.s32.totalorder %s19, 1
      %p93 = por %p91, %p92
      %p94 = scmp.ne.s32.totalorder %s83, %s84
      %p95 = scmp.eq.s32.totalorder %s19, 0
      %p96 = por %p94, %p95
      %p97 = scmp.ne.s32.totalorder %s83, %s84
      %p98 = scmp.eq.s32.totalorder %s20, 1
      %p99 = por %p97, %p98
      %p101 = scmp.ne.s32.totalorder %s84, %s100
      %p102 = scmp.eq.s32.totalorder %s20, 0
      %p103 = por %p101, %p102
      %s104 = ssub.s32 %s22, %s29
      %s105 = ssub.s32 %s21, %s33
      %s106 = sor.u32 %s104, %s105
      %p107 = scmp.eq.s32.totalorder %s106, 0
      %s109 = sadd.s32 %s108, 1
      %s110 = scalar_select %p107, %s108, %s109
      %p113 = pneg %p107
      %p114 = scmp.eq.s32.totalorder %s14, 1
      %p115 = por %p113, %p114
      %p116 = scmp.ne.s32.totalorder %s108, %s111
      %p117 = scmp.eq.s32.totalorder %s14, 0
      %p118 = por %p116, %p117
      %p119 = scmp.ne.s32.totalorder %s108, %s111
      %p120 = scmp.eq.s32.totalorder %s19, 1
      %p121 = por %p119, %p120
      %p122 = scmp.ne.s32.totalorder %s111, %s112
      %p123 = scmp.eq.s32.totalorder %s19, 0
      %p124 = por %p122, %p123
      %p125 = scmp.ne.s32.totalorder %s111, %s112
      %p126 = scmp.eq.s32.totalorder %s20, 1
      %p127 = por %p125, %p126
      %p129 = scmp.ne.s32.totalorder %s112, %s128
      %p130 = scmp.eq.s32.totalorder %s20, 0
      %p131 = por %p129, %p130
      %p132 = scmp.le.s32.totalorder 1, %s14
      %p133 = scmp.lt.s32.totalorder %s14, 3
      %p134 = pnand %p132, %p133
      %p135 = pneg %p134
      // Predicated region
      $region9: #{tpu_custom_call.1} parent=5 // pred_check
        _
      $region10: #{tpu_custom_call.1} parent=5 // pred_check_branch
        %137 = sbr.rel (%p134) target = $region12
      $region11: #{tpu_custom_call.1} parent=5 // pred_region
        %s138 = ssub.s32 %s14, 1
        // Predicated region
        $region13: #{tpu_custom_call.1} parent=11 // pred_check
          %p139 = pneg %p47
        $region14: #{tpu_custom_call.1} parent=11 // pred_check_branch
          %141 = sbr.rel (%p139) target = $region16
        $region15: #{tpu_custom_call.1} parent=11 // pred_region
          %s143 = ssub.s32 64, 64
          %144 = vsyncadd [#allocation4], %s143
          %147 = dma.hbm_to_smem %s0, 64, [#allocation2], [#allocation4]
        $region16: #{tpu_custom_call.1} parent=11 // pred_fallthru
          _
        // Predicated region
        $region17: #{tpu_custom_call.1} parent=11 // pred_check
          %p148 = pneg %p68
        $region18: #{tpu_custom_call.1} parent=11 // pred_check_branch
          %150 = sbr.rel (%p148) target = $region20
        $region19: #{tpu_custom_call.1} parent=11 // pred_region
          %s152 = ssub.s32 16, 16
          %153 = vsyncadd [#allocation5], %s152
          %s155 = sshll.u32 %s1, 4
          %s156 = int_to_ptr.vmem [resolvable:$true] %s155
          %158 = dma.vmem_to_smem %s156, 16, [#allocation6], [#allocation5]
        $region20: #{tpu_custom_call.1} parent=11 // pred_fallthru
          _
      $region12: #{tpu_custom_call.1} parent=5 // pred_fallthru
        _
      %p159 = scmp.lt.s32.totalorder %s14, 2
      // Predicated region
      $region21: #{tpu_custom_call.1} parent=5 // pred_check
        %p160 = pneg %p159
      $region22: #{tpu_custom_call.1} parent=5 // pred_check_branch
        %162 = sbr.rel (%p160) target = $region24
      $region23: #{tpu_custom_call.1} parent=5 // pred_region
        // Predicated region
        $region25: #{tpu_custom_call.1} parent=23 // pred_check
          %p163 = pneg %p90
        $region26: #{tpu_custom_call.1} parent=23 // pred_check_branch
          %165 = sbr.rel (%p163) target = $region28
        $region27: #{tpu_custom_call.1} parent=23 // pred_region
          %s166 = sand.u32 %s80, 1
          %s167 = scalar_lea.sflag [#allocation3], %s166
          %s168 = sand.u32 %s80, 1
          %s169 = smul.addr %s168, 8
          %s170 = scalar_lea.vmem [#allocation7], %s169
          %s171 = smul.u32 2, %s21
          %s173 = ssub.s32 128, 128
          %174 = vsyncadd %s167, %s173
          %s175 = smul.addr %s22, 2
          %s176 = sadd.s32 %s171, %s175
          %s177 = smul.addr %s176, 64
          %s178 = scalar_lea.hbm %s2, %s177
          %s180 = sshll.u32 %s170, 4
          %s181 = int_to_ptr.vmem [resolvable:$true] %s180
          %183 = dma.hbm_to_vmem [thread:$0]  %s178, 128, %s181, %s167
        $region28: #{tpu_custom_call.1} parent=23 // pred_fallthru
          _
      $region24: #{tpu_custom_call.1} parent=5 // pred_fallthru
        _
      %p184 = scmp.le.s32.totalorder 1, %s14
      %p185 = scmp.lt.s32.totalorder %s14, 3
      %p186 = pnand %p184, %p185
      %p187 = pneg %p186
      // Predicated region
      $region29: #{tpu_custom_call.1} parent=5 // pred_check
        _
      $region30: #{tpu_custom_call.1} parent=5 // pred_check_branch
        %189 = sbr.rel (%p186) target = $region32
      $region31: #{tpu_custom_call.1} parent=5 // pred_region
        %s190 = ssub.s32 %s14, 1
        // Predicated region
        $region33: #{tpu_custom_call.1} parent=31 // pred_check
          %p191 = pneg %p47
        $region34: #{tpu_custom_call.1} parent=31 // pred_check_branch
          %193 = sbr.rel (%p191) target = $region36
        $region35: #{tpu_custom_call.1} parent=31 // pred_region
          %194 = dma.done [#allocation4], 64
        $region36: #{tpu_custom_call.1} parent=31 // pred_fallthru
          _
        // Predicated region
        $region37: #{tpu_custom_call.1} parent=31 // pred_check
          %p195 = pneg %p68
        $region38: #{tpu_custom_call.1} parent=31 // pred_check_branch
          %197 = sbr.rel (%p195) target = $region40
        $region39: #{tpu_custom_call.1} parent=31 // pred_region
          %198 = dma.done [#allocation5], 16
        $region40: #{tpu_custom_call.1} parent=31 // pred_fallthru
          _
        %s199 = sand.u32 %s83, 1
        %s200 = scalar_lea.sflag [#allocation3], %s199
        %s201 = sand.u32 %s83, 1
        %s202 = smul.addr %s201, 8
        %s203 = scalar_lea.vmem [#allocation7], %s202
        // Predicated region
        $region41: #{tpu_custom_call.1} parent=31 // pred_check
          %p204 = pneg %p96
        $region42: #{tpu_custom_call.1} parent=31 // pred_check_branch
          %206 = sbr.rel (%p204) target = $region44
        $region43: #{tpu_custom_call.1} parent=31 // pred_region
          %207 = dma.done %s200, 128
        $region44: #{tpu_custom_call.1} parent=31 // pred_fallthru
          _
        %208 = sfence
        %p209 = pneg %p47
        %p210 = pneg %p44
        %p211 = pneg %p68
        %p212 = pneg %p65
        %s213 = sand.u32 %s83, 1
        %s214 = scalar_lea.sflag [#allocation3], %s213
        %s215 = sand.u32 %s83, 1
        %s216 = smul.addr %s215, 8
        %s217 = scalar_lea.vmem [#allocation7], %s216
        %p218 = pneg %p96
        %p219 = pneg %p93
        %p220 = pneg %p124
        %p221 = pneg %p121
        %s222 = smul.u32 2, %s23
        %p223 = scmp.lt.s32.totalorder %s24, 1
        %s224 = scalar_select %p223, %s24, 1
        %p225 = scmp.lt.s32.totalorder %s222, 1
        %s226 = scalar_select %p225, %s222, 1
        %s227 = smul.addr %s224, 2
        %s228 = sadd.s32 %s226, %s227
        %s229 = smul.addr %s228, 4
        %s230 = scalar_lea.vmem %s3, %s229
        %s231 = smul.u32 2, %s23
        %s232 = smul.u32 2, %s23
        %p233 = scmp.lt.s32.totalorder %s24, 1
        %s234 = scalar_select %p233, %s24, 1
        %p235 = scmp.lt.s32.totalorder %s232, 1
        %s236 = scalar_select %p235, %s232, 1
        %s237 = smul.addr %s234, 2
        %s238 = sadd.s32 %s236, %s237
        %s239 = smul.addr %s238, 4
        %s240 = scalar_lea.vmem %s3, %s239
        %s241 = smul.u32 2, %s23
        %v242 = vld [vmem:[%s203] ss:$4 sm:$0x3]
        %s243 = scalar_lea.vmem %s203, 1 [#allocation7]
        %v244 = vld [vmem:[%s243] ss:$4 sm:$0x3]
        %s245 = scalar_lea.vmem %s203, 2 [#allocation7]
        %v246 = vld [vmem:[%s245] ss:$4 sm:$0x3]
        %s247 = scalar_lea.vmem %s203, 3 [#allocation7]
        %v248 = vld [vmem:[%s247] ss:$4 sm:$0x3]
        %s249 = sld [smem:[#allocation2]]
        %v250 = vstv %s249
        %v251 = vmul.f32 %v242, %v250
        %s252 = sld [smem:[#allocation2 + $0x1]]
        %v253 = vstv %s252
        %v254 = vmul.f32 %v244, %v253
        %v255 = vadd.f32 %v251, %v254
        %s256 = sld [smem:[#allocation2 + $0x2]]
        %v257 = vstv %s256
        %v258 = vmul.f32 %v246, %v257
        %v259 = vadd.f32 %v255, %v258
        %s260 = sld [smem:[#allocation2 + $0x3]]
        %v261 = vstv %s260
        %v262 = vmul.f32 %v248, %v261
        %v263 = vadd.f32 %v259, %v262
        %s264 = sld [smem:[#allocation6]]
        %v265 = vstv %s264
        %v266 = vadd.f32 %v263, %v265
        %s267 = sld [smem:[#allocation2 + $0x80]]
        %v268 = vstv %s267
        %v269 = vmul.f32 %v242, %v268
        %s270 = sld [smem:[#allocation2 + $0x81]]
        %v271 = vstv %s270
        %v272 = vmul.f32 %v244, %v271
        %v273 = vadd.f32 %v269, %v272
        %s274 = sld [smem:[#allocation2 + $0x82]]
        %v275 = vstv %s274
        %v276 = vmul.f32 %v246, %v275
        %v277 = vadd.f32 %v273, %v276
        %s278 = sld [smem:[#allocation2 + $0x83]]
        %v279 = vstv %s278
        %v280 = vmul.f32 %v248, %v279
        %v281 = vadd.f32 %v277, %v280
        %s282 = sld [smem:[#allocation6 + $0x1]]
        %v283 = vstv %s282
        %v284 = vadd.f32 %v281, %v283
        %s285 = sld [smem:[#allocation2 + $0x100]]
        %v286 = vstv %s285
        %v287 = vmul.f32 %v242, %v286
        %s288 = sld [smem:[#allocation2 + $0x101]]
        %v289 = vstv %s288
        %v290 = vmul.f32 %v244, %v289
        %v291 = vadd.f32 %v287, %v290
        %s292 = sld [smem:[#allocation2 + $0x102]]
        %v293 = vstv %s292
        %v294 = vmul.f32 %v246, %v293
        %v295 = vadd.f32 %v291, %v294
        %s296 = sld [smem:[#allocation2 + $0x103]]
        %v297 = vstv %s296
        %v298 = vmul.f32 %v248, %v297
        %v299 = vadd.f32 %v295, %v298
        %s300 = sld [smem:[#allocation6 + $0x2]]
        %v301 = vstv %s300
        %v302 = vadd.f32 %v299, %v301
        %v304 = vlaneseq
        %v305 = vshrl.u32 %v304, 7
        %v306 = vsub.s32 0, %v305
        %v307 = vrot.slane %v266, %v306
        %v308 = vlaneseq
        %v309 = vshrl.u32 %v308, 7
        %v310 = vsub.s32 1, %v309
        %v311 = vrot.slane %v266, %v310
        %v315 = vlaneseq
        %v316 = vshrl.u32 %v315, 7
        %v317 = vsub.s32 0, %v316
        %v318 = vrot.slane %v284, %v317
        %v319 = vlaneseq
        %v320 = vshrl.u32 %v319, 7
        %v321 = vsub.s32 1, %v320
        %v322 = vrot.slane %v284, %v321
        %v326 = vlaneseq
        %v327 = vshrl.u32 %v326, 7
        %v328 = vsub.s32 0, %v327
        %v329 = vrot.slane %v302, %v328
        %v330 = vlaneseq
        %v331 = vshrl.u32 %v330, 7
        %v332 = vsub.s32 1, %v331
        %v333 = vrot.slane %v302, %v332
        %vm336 = vcmask 1040384
        %v337 = vsel %vm336, %v307, %v318
        %v338 = vsel %vm336, %v311, %v322
        %vm339 = vcmask 1041408
        %v340 = vsel %vm339, %v337, %v329
        %v341 = vsel %vm339, %v338, %v333
        %v344 = vcombine.low %v340, %v341
        %346 = vst [vmem:[%s240] sm:$0x77] %v344
        %s347 = smul.u32 2, %s23
        %p348 = scmp.lt.s32.totalorder %s24, 1
        %s349 = scalar_select %p348, %s24, 1
        %p350 = scmp.lt.s32.totalorder %s347, 1
        %s351 = scalar_select %p350, %s347, 1
        %s352 = smul.addr %s349, 2
        %s353 = sadd.s32 %s351, %s352
        %s354 = smul.addr %s353, 4
        %s355 = scalar_lea.vmem %s3, %s354
        // Predicated region
        $region45: #{tpu_custom_call.1} parent=31 // pred_check
          %p356 = pneg %p121
        $region46: #{tpu_custom_call.1} parent=31 // pred_check_branch
          %358 = sbr.rel (%p356) target = $region48
        $region47: #{tpu_custom_call.1} parent=31 // pred_region
          %s359 = smul.u32 2, %s23
        $region48: #{tpu_custom_call.1} parent=31 // pred_fallthru
          _
      $region32: #{tpu_custom_call.1} parent=5 // pred_fallthru
        _
      %p360 = scmp.le.s32.totalorder 2, %s14
      // Predicated region
      $region49: #{tpu_custom_call.1} parent=5 // pred_check
        %p361 = pneg %p360
      $region50: #{tpu_custom_call.1} parent=5 // pred_check_branch
        %363 = sbr.rel (%p361) target = $region52
      $region51: #{tpu_custom_call.1} parent=5 // pred_region
        %s364 = ssub.s32 %s14, 2
        // Predicated region
        $region53: #{tpu_custom_call.1} parent=51 // pred_check
          %p365 = pneg %p127
        $region54: #{tpu_custom_call.1} parent=51 // pred_check_branch
          %367 = sbr.rel (%p365) target = $region56
        $region55: #{tpu_custom_call.1} parent=51 // pred_region
          %s368 = smul.u32 2, %s25
          %p369 = scmp.lt.s32.totalorder %s26, 1
          %s370 = scalar_select %p369, %s26, 1
          %p371 = scmp.lt.s32.totalorder %s368, 1
          %s372 = scalar_select %p371, %s368, 1
          %s373 = smul.addr %s370, 2
          %s374 = sadd.s32 %s372, %s373
          %s375 = smul.addr %s374, 4
          %s376 = scalar_lea.vmem %s3, %s375
        $region56: #{tpu_custom_call.1} parent=51 // pred_fallthru
          _
      $region52: #{tpu_custom_call.1} parent=5 // pred_fallthru
        _
    $region6: #{tpu_custom_call.1} parent=1 // loop_footer
      %s18 = sadd.s32 1, %s14
    $region7: #{tpu_custom_call.1} parent=1 // loop_footer_branch
      %13 = sbr.rel target = $region3
    $region8: #{tpu_custom_call.1} parent=1 // loop_exit
      _
    %377 = vsyncpa [#allocation3], 1
    %s378 = scalar_lea.sflag [#allocation3], 1
    %379 = vsyncpa %s378, 1
    %380 = vsyncpa [#allocation4], 1
    %s381 = scalar_lea.sflag [#allocation4], 1
    %382 = vsyncpa %s381, 1
    %383 = vsyncpa [#allocation5], 1
    %s384 = scalar_lea.sflag [#allocation5], 1
    %385 = vsyncpa %s384, 1

</llo_original>
